<compile_context>
chip_gen: v7x
topology: tpu7x:2x2x1
jax: 0.10.0
libtpu: 0.0.40
codegen_flags: <defaults>
</compile_context>

<pallas_src>
import math

import jax
import jax.numpy as jnp
import numpy as np
from jax.experimental import pallas as pl
from jax.experimental.pallas import tpu as pltpu


# Target size of the double-buffered VMEM working set (input + output tiles).
_VMEM_WORKSET_BUDGET = 16 * 1024 * 1024
_VMEM_LIMIT_CAP = 100 * 1024 * 1024


def _sublane_granule(dtype) -> int:
    """Minimum second-to-last-dim tile for a dtype (8 for 32-bit, 16 for 16-bit,
    32 for 8-bit): sub-32-bit dtypes pack along sublanes."""
    itemsize = jnp.dtype(dtype).itemsize
    return max(8, 8 * (4 // max(itemsize, 1)))


def _make_cat_kernel(col_offsets, widths, out_dtype):
    """Kernel: copy each lane-dense input tile into its static column range of
    the output tile.  All refs are 2-D (row_tile, width) VMEM blocks; column
    offsets/widths are static Python ints, so each copy is a single store."""

    def kernel(*refs):
        in_refs, out_ref = refs[:-1], refs[-1]
        for r, c0, w in zip(in_refs, col_offsets, widths):
            out_ref[:, c0:c0 + w] = r[...].astype(out_dtype)

    return kernel


def pallas_cat(tensors, dim):
    """torch.cat(tensors, dim) semantics, copy performed by a Pallas TPU kernel."""
    tensors = [jnp.asarray(t) for t in tensors]
    ndim = tensors[0].ndim
    axis = dim % ndim
    out_dtype = jnp.result_type(*[t.dtype for t in tensors])

    shape0 = tensors[0].shape
    pre = math.prod(shape0[:axis])
    post = math.prod(shape0[axis + 1:])
    sizes = [int(t.shape[axis]) for t in tensors]
    total = sum(sizes)

    out_shape = list(shape0)
    out_shape[axis] = total
    out_shape = tuple(out_shape)

    # Zero-size inputs are legal for torch.cat; drop them so no 0-extent store
    # ever reaches Mosaic.  Degenerate (empty) outputs skip the kernel.
    kept = [(t, s) for t, s in zip(tensors, sizes) if s > 0]
    width_total = total * post
    if pre == 0 or width_total == 0 or not kept:
        return jnp.zeros(out_shape, out_dtype)

    # Lane-dense 2-D view: merge cat axis with `post` -> contiguous column slabs.
    widths = [s * post for _, s in kept]
    col_offsets = []
    off = 0
    for w in widths:
        col_offsets.append(off)
        off += w
    slabs = [t.reshape(pre, w) for (t, _), w in zip(kept, widths)]  # pure views

    # Row tile from a VMEM budget (double-buffered inputs + output), aligned to
    # the coarsest sublane granule among all participating dtypes.
    sublane = max(_sublane_granule(out_dtype),
                  *[_sublane_granule(t.dtype) for t, _ in kept])
    out_itemsize = jnp.dtype(out_dtype).itemsize
    in_row_bytes = sum(w * jnp.dtype(t.dtype).itemsize
                       for (t, _), w in zip(kept, widths))
    per_row_bytes = in_row_bytes + width_total * out_itemsize   # inputs + output
    max_rows = max(_VMEM_WORKSET_BUDGET // (2 * per_row_bytes), 1)
    if pre <= max_rows:
        row_tile = pre                                           # full dim -> legal
    else:
        row_tile = max(sublane, (max_rows // sublane) * sublane)
    grid_m = pl.cdiv(pre, row_tile)

    working_set = 2 * per_row_bytes * row_tile                   # double-buffered tiles
    vmem_limit = int(min(max(2 * working_set, 32 << 20), _VMEM_LIMIT_CAP))

    kernel = _make_cat_kernel(col_offsets, widths, out_dtype)
    out2d = pl.pallas_call(
        kernel,
        out_shape=jax.ShapeDtypeStruct((pre, width_total), out_dtype),
        grid=(grid_m,),
        in_specs=[pl.BlockSpec((row_tile, w), lambda i: (i, 0)) for w in widths],
        out_specs=pl.BlockSpec((row_tile, width_total), lambda i: (i, 0)),
        compiler_params=pltpu.CompilerParams(
            dimension_semantics=("parallel",),        # shard rows across TCs (v7x)
            vmem_limit_bytes=vmem_limit,
        ),
    )(*slabs)

    return out2d.reshape(out_shape)


if __name__ == "__main__":
    key = jax.random.PRNGKey(0)
    k = iter(jax.random.split(key, 32))

    test_cases = [
        # (tensors, dim) -- mirrors Cat.test_parameters
        ((jnp.ones((1,), jnp.float32), jnp.ones((1,), jnp.float32)), 0),
        ((jnp.ones((1, 2), jnp.float32),
          jax.random.normal(next(k), (1, 5), jnp.float32),
          jax.random.normal(next(k), (1, 1), jnp.float32)), 1),
        ((jnp.ones((1, 2, 5), jnp.float32),
          jax.random.normal(next(k), (1, 2, 4), jnp.float32),
          jax.random.normal(next(k), (1, 2, 2), jnp.float32),
          jax.random.normal(next(k), (1, 2, 1), jnp.float32)), -1),
        ((jax.random.normal(next(k), (1, 2, 4, 4), jnp.float32),
          jax.random.normal(next(k), (1, 2, 4, 1), jnp.float32)), 3),
        ((jax.random.normal(next(k), (1, 2, 4, 4), jnp.float32),
          jax.random.normal(next(k), (1, 2, 4, 4), jnp.float32)), 0),
        ((jax.random.normal(next(k), (2, 2, 4, 4), jnp.float32),
          jax.random.normal(next(k), (2, 2, 4, 1), jnp.float32)), 3),
        ((10000.0 * jax.random.normal(next(k), (2, 3, 1, 4), jnp.float32),
          jax.random.normal(next(k), (2, 7, 1, 4), jnp.float32),
          jax.random.normal(next(k), (2, 1, 1, 4), jnp.float32)), -3),
        # zero-size input (legal for torch.cat) -- exercises the guard
        ((jax.random.normal(next(k), (2, 3), jnp.float32),
          jnp.zeros((2, 0), jnp.float32)), 1),
        # mixed dtypes -> in-kernel promotion path
        ((jax.random.normal(next(k), (4, 8), jnp.float32),
          jax.random.normal(next(k), (4, 8), jnp.bfloat16)), 1),
        # lane-dense tiled path: pre=2048 rows, 128-aligned columns, grid > 1
        ((jax.random.normal(next(k), (2048, 512), jnp.float32),
          jax.random.normal(next(k), (2048, 512), jnp.float32)), 1),
    ]

    for tensors, dim in test_cases:
        got = jax.block_until_ready(pallas_cat(tensors, dim))
        ref = jnp.concatenate([t.astype(jnp.result_type(*[x.dtype for x in tensors]))
                               for t in tensors], axis=dim)
        assert got.shape == ref.shape, (got.shape, ref.shape)
        assert got.dtype == ref.dtype, (got.dtype, ref.dtype)
        np.testing.assert_allclose(np.asarray(got, np.float32),
                                   np.asarray(ref, np.float32), rtol=0, atol=0)

    print("KERNEL_OK")
</pallas_src>

<mosaic_0001>
module attributes {stable_mosaic.version = 11 : i64} {
  func.func @kernel(%arg0: i32, %arg1: memref<1x1xf32, #tpu.memory_space<vmem>>, %arg2: memref<1x1xf32, #tpu.memory_space<vmem>>, %arg3: memref<1x2xf32, #tpu.memory_space<vmem>>) attributes {dimension_semantics = [#tpu.dimension_semantics<parallel>], iteration_bounds = array<i64: 1>, scalar_prefetch = 0 : i64, scratch_operands = 0 : i64, tpu.core_type = #tpu.core_type<tc>, window_params = [{transform_indices = @transform_0, window_bounds = array<i64: 1, 1>}, {transform_indices = @transform_1, window_bounds = array<i64: 1, 1>}, {transform_indices = @transform_2, window_bounds = array<i64: 1, 2>}]} {
    %c0 = arith.constant 0 : index
    %c0_0 = arith.constant 0 : index
    %0 = vector.load %arg1[%c0, %c0_0] : memref<1x1xf32, #tpu.memory_space<vmem>>, vector<1x1xf32>
    %c0_1 = arith.constant 0 : index
    %c0_2 = arith.constant 0 : index
    %1 = vector.load %arg3[%c0_1, %c0_2] : memref<1x2xf32, #tpu.memory_space<vmem>>, vector<1x1xf32>
    tpu.vector_store %arg3[%c0_1, %c0_2], %0 {strides = array<i32>} : memref<1x2xf32, #tpu.memory_space<vmem>>, vector<1x1xf32>,
    %c0_3 = arith.constant 0 : index
    %c0_4 = arith.constant 0 : index
    %2 = vector.load %arg2[%c0_3, %c0_4] : memref<1x1xf32, #tpu.memory_space<vmem>>, vector<1x1xf32>
    %c0_5 = arith.constant 0 : index
    %c1 = arith.constant 1 : index
    %3 = vector.load %arg3[%c0_5, %c1] : memref<1x2xf32, #tpu.memory_space<vmem>>, vector<1x1xf32>
    tpu.vector_store %arg3[%c0_5, %c1], %2 {strides = array<i32>} : memref<1x2xf32, #tpu.memory_space<vmem>>, vector<1x1xf32>,
    return
  }
  func.func @transform_0(%arg0: i32) -> (i32, i32) {
    %c0_i32 = arith.constant 0 : i32
    %c0_i32_0 = arith.constant 0 : i32
    return %arg0, %c0_i32 : i32, i32
  }
  func.func @transform_1(%arg0: i32) -> (i32, i32) {
    %c0_i32 = arith.constant 0 : i32
    %c0_i32_0 = arith.constant 0 : i32
    return %arg0, %c0_i32 : i32, i32
  }
  func.func @transform_2(%arg0: i32) -> (i32, i32) {
    %c0_i32 = arith.constant 0 : i32
    %c0_i32_0 = arith.constant 0 : i32
    return %arg0, %c0_i32 : i32, i32
  }
}

</mosaic_0001>

<llo_original>
// kernel: tpu_custom_call.1
$region0: #{tpu_custom_call.1}
  #allocation0 [shape = 'u32[]', space=smem, size = 0x4, offset = 0x4, fixed_abs, tag = 'smem constant byte address 0x4 - core index']
  #allocation1 [shape = 'u32[144,128]{1,0:T(1,128)}', space=vmem, size = 0x12000, scoped, tag = 'internal scratch']
  #allocation2 [shape = 'f32[1,1]{1,0:T(1,128)S(1)}', space=vmem, size = 0x200, scoped, tag = 'scoped memory for tpu_custom_call.1']
  #allocation3 [shape = 'f32[1,1]{1,0:T(1,128)S(1)}', space=vmem, size = 0x200, scoped, tag = 'scoped memory for tpu_custom_call.1']
  %s0 = inlined_call_operand.<no memory space> [shape: f32[1,1], index: 0, kind: input, shape index: {}]
  %s1 = inlined_call_operand.<no memory space> [shape: f32[1,1], index: 1, kind: input, shape index: {}]
  %s2 = inlined_call_operand.hbm [shape: f32[1,2], index: 2, kind: output, shape index: {}]
  %s3 = sld [smem:[#allocation0]]
  $region18: #{tpu_custom_call.1} parent=0
    _
  %s5 = ssub.s32 1, %s3
  %s6 = scalar_select 0, %s5, %s3
  %v7 = vstv %s0
  %8 = vst [vmem:[#allocation2] sm:$0x1] %v7
  %v9 = vstv %s1
  %10 = vst [vmem:[#allocation3] sm:$0x1] %v9
  $region1: #{tpu_custom_call.1} parent=0
    #allocation4 [shape = 'u8[512]{0}', space=vmem, size = 0x400, scoped, tag = 'output window, operand 0, single buffered']
    #allocation5 [shape = 's32[1]{0}', space=sflag, size = 0x4, scoped, tag = 'scoped memory for tpu_custom_call.1']
    %11 = vsyncpa [#allocation5], 0
    // Predicated region
    $region2: #{tpu_custom_call.1} parent=1 // pred_check
      _
    $region3: #{tpu_custom_call.1} parent=1 // pred_check_branch
      %13 = sbr.rel (0) target = $region5
    $region4: #{tpu_custom_call.1} parent=1 // pred_region
      _
    $region5: #{tpu_custom_call.1} parent=1 // pred_fallthru
      _
    // Predicated region
    $region6: #{tpu_custom_call.1} parent=1 // pred_check
      _
    $region7: #{tpu_custom_call.1} parent=1 // pred_check_branch
      %15 = sbr.rel (0) target = $region9
    $region8: #{tpu_custom_call.1} parent=1 // pred_region
      _
    $region9: #{tpu_custom_call.1} parent=1 // pred_fallthru
      _
    %v16 = vld [vmem:[#allocation2] sm:$0x1]
    %vm17 = vcmask 0
    %18 = vst.msk [vmem:[#allocation4] sm:$0x1] %vm17, %v16
    %v19 = vld [vmem:[#allocation3] sm:$0x1]
    %v21 = vlaneseq
    %v22 = vshrl.u32 %v21, 7
    %v23 = vsub.s32 0, %v22
    %v24 = vrot.slane %v19, %v23
    %25 = vrot.lane.b32.xlu0 %v24, 1
    %v26 = vpop.permute.xlu0 %25
    %vm28 = vcmask 8200
    %29 = vst.msk [vmem:[#allocation4] sm:$0x1] %vm28, %v26
    // Predicated region
    $region10: #{tpu_custom_call.1} parent=1 // pred_check
      _
    $region11: #{tpu_custom_call.1} parent=1 // pred_check_branch
      %31 = sbr.rel (0) target = $region13
    $region12: #{tpu_custom_call.1} parent=1 // pred_region
      %s33 = ssub.s32 16, 16
      %34 = vsyncadd [#allocation5], %s33
      %s36 = sshll.u32 [#allocation4], 4
      %s37 = int_to_ptr.vmem [resolvable:$true] %s36
      %39 = dma.vmem_to_hbm [thread:$0]  %s37, 16, %s2, [#allocation5]
    $region13: #{tpu_custom_call.1} parent=1 // pred_fallthru
      _
    // Predicated region
    $region14: #{tpu_custom_call.1} parent=1 // pred_check
      _
    $region15: #{tpu_custom_call.1} parent=1 // pred_check_branch
      %41 = sbr.rel (0) target = $region17
    $region16: #{tpu_custom_call.1} parent=1 // pred_region
      %42 = dma.done [#allocation5], 16
    $region17: #{tpu_custom_call.1} parent=1 // pred_fallthru
      _
    %43 = vsyncpa [#allocation5], 1

</llo_original>
